<compile_context>
chip_gen: v6e
topology: v6e:2x2x1
jax: 0.10.0
libtpu: 0.0.40
codegen_flags: <defaults>
</compile_context>

<pallas_src>
import functools
import math

import jax
import jax.numpy as jnp
from jax.experimental import pallas as pl
from jax.experimental.pallas import tpu as pltpu


# ----------------------------------------------------------------------------
# Hardware-aware tiling helpers
# ----------------------------------------------------------------------------
def _tpu_vmem_capacity_bytes():
    try:
        return int(pltpu.get_tpu_info().vmem_capacity_bytes)
    except Exception:
        return 128 << 20  # v5e/v6e physical VMEM


def _vmem_limit_bytes():
    # Scoped VMEM requested from Mosaic: half of physical, capped.
    # (v7x has 64 MiB physical, so this self-adjusts per generation.)
    return int(min(_tpu_vmem_capacity_bytes() // 2, 96 << 20))


def _largest_divisor(n, cap, mult):
    """Largest divisor of n that is <= cap and a multiple of `mult` (or None)."""
    best = None
    d = 1
    while d * d <= n:
        if n % d == 0:
            for c in (d, n // d):
                if c <= cap and c % mult == 0 and (best is None or c > best):
                    best = c
        d += 1
    return best


def _row_tile(R, cap):
    if R <= cap:
        return R
    return _largest_divisor(R, cap, 8) or R


def _lane_tile(L, cap):
    # assumes L % 128 == 0 (so 128 always divides L)
    if L <= cap:
        return L
    return _largest_divisor(L, cap, 128) or 128


def _stats_tiles_dense(R, L, itemsize):
    """Tiles for the stats kernel when L % 128 == 0.

    Small row tile (<=128) keeps the per-slab register accumulators
    (two f32 (tr,128) values) within vreg budget; lane tile is the biggest
    128-multiple divisor that fits the VMEM budget, capped at 64 slabs so the
    unrolled slab loop stays reasonable.
    """
    tr = _row_tile(R, 128)
    budget = min(_vmem_limit_bytes() // 2, 16 << 20)
    acc_bytes = 2 * tr * 128 * 4          # VMEM scratch accumulators
    lane_budget = max((budget - acc_bytes) // (2 * tr * itemsize), 128)
    lane_cap = max(int(min(lane_budget, 64 * 128)) // 128 * 128, 128)
    tl = _lane_tile(L, lane_cap)
    return tr, tl


def _stats_tiles_ragged(R, L, itemsize):
    """Row tile for the stats kernel when L % 128 != 0 (full-L blocks)."""
    budget = min(_vmem_limit_bytes() // 2, 16 << 20)
    row_cap = min(max(budget // (2 * L * itemsize), 8), 512)
    return _row_tile(R, row_cap)


def _norm_tiles(R, L, in_itemsize, out_itemsize):
    """Tiles for the streaming normalize kernel: biggest lane-dense tile that
    fits (real dtypes accounted, so bf16 inputs get proportionally bigger
    tiles), with a budget guard for ragged L."""
    budget = min(_vmem_limit_bytes() // 2, 24 << 20)
    per_elem = 2 * in_itemsize + 2 * out_itemsize   # double-buffered in + out
    tr = _row_tile(R, 512)
    if L % 128 == 0:
        lane_cap = max((budget // (per_elem * tr)) // 128 * 128, 128)
        tl = _lane_tile(L, lane_cap)
    else:
        row_cap = min(max(budget // (per_elem * L), 8), 512)
        tr = _row_tile(R, row_cap)
        tl = L
    return tr, tl


# ----------------------------------------------------------------------------
# Pallas kernels
# ----------------------------------------------------------------------------
def _stats_kernel_slabbed(x_ref, sum_ref, sumsq_ref, acc_s_ref, acc_q_ref, *,
                          lane_slabs):
    """Per-row (per n,c) sum / sum-of-squares, lane-dense path.

    All 128-lane slabs of this grid step are accumulated into register values
    (one VMEM read-modify-write of the scratch accumulators per grid step);
    the cross-lane fold to width-1 happens only on the last lane step (XLU),
    so only (tr,1)-wide partials are ever written to HBM.
    """
    j = pl.program_id(1)

    x0 = x_ref[:, 0:128].astype(jnp.float32)
    s = x0
    q = x0 * x0
    for k in range(1, lane_slabs):
        xk = x_ref[:, k * 128:(k + 1) * 128].astype(jnp.float32)
        s = s + xk
        q = q + xk * xk

    @pl.when(j == 0)
    def _():
        acc_s_ref[...] = s
        acc_q_ref[...] = q

    @pl.when(j > 0)
    def _():
        acc_s_ref[...] += s
        acc_q_ref[...] += q

    @pl.when(j == pl.num_programs(1) - 1)
    def _():
        sum_ref[...] = jnp.sum(acc_s_ref[...], axis=1, keepdims=True)
        sumsq_ref[...] = jnp.sum(acc_q_ref[...], axis=1, keepdims=True)


def _stats_kernel_ragged(x_ref, sum_ref, sumsq_ref):
    """Per-row sum / sum-of-squares when L is not a multiple of 128
    (single full-L lane block per row block)."""
    x = x_ref[...].astype(jnp.float32)
    sum_ref[...] = jnp.sum(x, axis=1, keepdims=True)
    sumsq_ref[...] = jnp.sum(x * x, axis=1, keepdims=True)


def _norm_kernel(x_ref, scale_ref, shift_ref, o_ref, *,
                 qmode, qmax, post_scale, clip):
    """Fused y = x*scale + shift followed by activation quantize / clamp."""
    x = x_ref[...]
    if x.dtype != jnp.float32:
        x = x.astype(jnp.float32)
    y = x * scale_ref[...] + shift_ref[...]          # one mul + one add / elem
    if qmode in ('T', 'Q'):
        # FixedQuantize (signed); qmax/t already folded into scale/shift.
        y = jnp.clip(jnp.round(y), -qmax, qmax - 1.0)
        if post_scale != 1.0:
            y = y * post_scale
    else:
        # FixedQuantize 'F' mode: clamp to +/- clip.
        y = jnp.clip(y, -clip, clip)
    if y.dtype != o_ref.dtype:
        y = y.astype(o_ref.dtype)
    o_ref[...] = y


# ----------------------------------------------------------------------------
# Pallas wrappers
# ----------------------------------------------------------------------------
def channel_stats(x2d, N, C):
    """Per-channel (mean, mean-of-squares) for x2d of shape (N*C, H*W)."""
    R, L = x2d.shape
    itemsize = jnp.dtype(x2d.dtype).itemsize
    out_shape = (jax.ShapeDtypeStruct((R, 1), jnp.float32),
                 jax.ShapeDtypeStruct((R, 1), jnp.float32))

    if L % 128 == 0:
        tr, tl = _stats_tiles_dense(R, L, itemsize)
        lane_slabs = tl // 128
        kern = functools.partial(_stats_kernel_slabbed, lane_slabs=lane_slabs)
        sums, sumsqs = pl.pallas_call(
            kern,
            out_shape=out_shape,
            grid_spec=pltpu.PrefetchScalarGridSpec(
                num_scalar_prefetch=0,
                grid=(R // tr, L // tl),
                in_specs=[pl.BlockSpec((tr, tl), lambda i, j: (i, j))],
                out_specs=(pl.BlockSpec((tr, 1), lambda i, j: (i, 0)),
                           pl.BlockSpec((tr, 1), lambda i, j: (i, 0))),
                scratch_shapes=[pltpu.VMEM((tr, 128), jnp.float32),
                                pltpu.VMEM((tr, 128), jnp.float32)]),
            compiler_params=pltpu.CompilerParams(
                dimension_semantics=("parallel", "arbitrary"),
                vmem_limit_bytes=_vmem_limit_bytes()),
        )(x2d)
    else:
        tr = _stats_tiles_ragged(R, L, itemsize)
        sums, sumsqs = pl.pallas_call(
            _stats_kernel_ragged,
            out_shape=out_shape,
            grid_spec=pltpu.PrefetchScalarGridSpec(
                num_scalar_prefetch=0,
                grid=(R // tr,),
                in_specs=[pl.BlockSpec((tr, L), lambda i: (i, 0))],
                out_specs=(pl.BlockSpec((tr, 1), lambda i: (i, 0)),
                           pl.BlockSpec((tr, 1), lambda i: (i, 0)))),
            compiler_params=pltpu.CompilerParams(
                dimension_semantics=("parallel",),
                vmem_limit_bytes=_vmem_limit_bytes()),
        )(x2d)

    # Tiny glue (inside the outer jit): fold (R,1) row sums -> per-channel means.
    M = x2d.size // C                        # = N * H * W
    ch_sum = sums.reshape(N, C).sum(axis=0)
    ch_sumsq = sumsqs.reshape(N, C).sum(axis=0)
    return ch_sum / M, ch_sumsq / M


def normalize_quantize(x2d, scale_rows, shift_rows, *, bits, clip, qmode):
    """y = x*scale + shift per (n,c) row, then activation quantize/clamp."""
    R, L = x2d.shape
    in_item = jnp.dtype(x2d.dtype).itemsize
    out_item = in_item
    tr, tl = _norm_tiles(R, L, in_item, out_item)

    if qmode in ('T', 'Q'):
        lt = math.log2(clip) - 1e-08
        t = math.exp(math.ceil(lt) * math.log(2.0))
        qmax = float(2 ** (bits - 1))
        # Fold the compile-time qmax/t factor into scale/shift.
        scale_rows = scale_rows * (qmax / t)
        shift_rows = shift_rows * (qmax / t)
        post_scale = t / qmax
    else:
        qmax = 1.0
        post_scale = 1.0

    kern = functools.partial(_norm_kernel, qmode=qmode, qmax=qmax,
                             post_scale=post_scale, clip=float(clip))
    vec_spec = pl.BlockSpec((tr, 1), lambda i, j: (i, 0))
    return pl.pallas_call(
        kern,
        out_shape=jax.ShapeDtypeStruct((R, L), x2d.dtype),
        grid_spec=pltpu.PrefetchScalarGridSpec(
            num_scalar_prefetch=0,
            grid=(R // tr, L // tl),
            in_specs=[pl.BlockSpec((tr, tl), lambda i, j: (i, j)),
                      vec_spec, vec_spec],
            out_specs=pl.BlockSpec((tr, tl), lambda i, j: (i, j))),
        compiler_params=pltpu.CompilerParams(
            dimension_semantics=("parallel", "parallel"),
            vmem_limit_bytes=_vmem_limit_bytes()),
    )(x2d,
      scale_rows.reshape(R, 1).astype(jnp.float32),
      shift_rows.reshape(R, 1).astype(jnp.float32))


# ----------------------------------------------------------------------------
# Per-channel quantize helper + jitted functional forward steps
# ----------------------------------------------------------------------------
def fixed_quantize_vec(x, bits, clip, qmode):
    """FixedQuantize forward for small parameter vectors (plain JAX glue)."""
    if qmode in ('T', 'Q'):
        lt = math.log2(clip) - 1e-08
        t = math.exp(math.ceil(lt) * math.log(2.0))
        qmax = float(2 ** (bits - 1))
        s = x * qmax / t
        return jnp.clip(jnp.round(s), -qmax, qmax - 1.0) * t / qmax
    return jnp.clip(x, -clip, clip)


def _train_step(X, gamma, beta, mean_ba, msq_ba, mean_mv, var_mv, step, *,
                mom_ba, mom_mv, eps, qbits_a, amax, qbits_b, bmax,
                qmode, update_every):
    """One training forward (stats + EMA + normalize), single jitted dispatch."""
    N, C, H, W = X.shape
    # Stay in NCHW: view as (N*C, H*W) so H*W is the lane-dense fast axis.
    x2d = X.reshape(N * C, H * W)

    mean, msq = channel_stats(x2d, N, C)            # Pallas reduction kernel
    mean_ba = mom_ba * mean_ba + (1.0 - mom_ba) * mean
    msq_ba = mom_ba * msq_ba + (1.0 - mom_ba) * msq
    bias_correct = 1.0 - jnp.power(jnp.float32(mom_ba), step.astype(jnp.float32))
    mu_ba = mean_ba / bias_correct
    # NOTE: E[x^2]-E[x]^2 in fp32 matches the reference module but can lose
    # precision when |mean| >> std.
    var_ba = jax.nn.relu(msq_ba / bias_correct - mu_ba * mu_ba)
    std_ba = jnp.sqrt(var_ba + eps)

    do_mv = (step % update_every) == 0
    mean_mv = jnp.where(do_mv, mom_mv * mean_mv + (1.0 - mom_mv) * mu_ba, mean_mv)
    var_mv = jnp.where(do_mv, mom_mv * var_mv + (1.0 - mom_mv) * var_ba, var_mv)

    gamma_q = fixed_quantize_vec(gamma, qbits_b, bmax, qmode)
    beta_q = fixed_quantize_vec(beta, qbits_b, bmax, qmode)

    # Fold normalization + affine into one per-channel scale/shift:
    #   gamma*(x - mu)/std + beta  ==  x*scale + shift
    scale_c = gamma_q / std_ba
    shift_c = beta_q - mu_ba * scale_c
    scale_rows = jnp.tile(scale_c, N)               # row r -> channel r % C
    shift_rows = jnp.tile(shift_c, N)

    y2d = normalize_quantize(x2d, scale_rows, shift_rows,
                             bits=qbits_a, clip=amax, qmode=qmode)
    Y = y2d.reshape(N, C, H, W)
    return Y, mean_ba, msq_ba, mu_ba, std_ba, mean_mv, var_mv


def _eval_step(X, gamma, beta, mean_mv, var_mv, *,
               eps, qbits_a, amax, qbits_b, bmax, qmode):
    N, C, H, W = X.shape
    x2d = X.reshape(N * C, H * W)
    mu = mean_mv
    std = jnp.sqrt(var_mv + eps)
    gamma_q = fixed_quantize_vec(gamma, qbits_b, bmax, qmode)
    beta_q = fixed_quantize_vec(beta, qbits_b, bmax, qmode)
    scale_c = gamma_q / std
    shift_c = beta_q - mu * scale_c
    y2d = normalize_quantize(x2d, jnp.tile(scale_c, N), jnp.tile(shift_c, N),
                             bits=qbits_a, clip=amax, qmode=qmode)
    return y2d.reshape(N, C, H, W), mu, std


# ----------------------------------------------------------------------------
# Module equivalent (state in Python, compute in one jitted step)
# ----------------------------------------------------------------------------
class QStreamBatchnormNdPallas:
    def __init__(self, N, channels, qbits, update_every_ba=10,
                 update_every_mv=1000, momentum=0.05, eps=1e-05):
        self.N = N
        self.channels = channels
        self.update_every = int(max(1, update_every_ba))
        self.mom_ba = 1.0 - 1.0 / update_every_ba
        self.mom_mv = 1.0 - 1.0 / (update_every_mv / update_every_ba)
        # NOTE: the PyTorch module hard-codes self.eps = 1e-08 (ignores the
        # `eps` constructor argument); match that to preserve semantics.
        self.eps = 1e-08
        self.qbits = qbits
        # parameters (module __init__: gamma=1, beta=0)
        self.gamma = jnp.ones((channels,), jnp.float32)
        self.beta = jnp.zeros((channels,), jnp.float32)
        # buffers
        self.mu = jnp.zeros((channels,), jnp.float32)
        self.std = jnp.zeros((channels,), jnp.float32)
        self.mean_ba = jnp.zeros((channels,), jnp.float32)
        self.msq_ba = jnp.zeros((channels,), jnp.float32)
        self.mean_mv = jnp.zeros((channels,), jnp.float32)
        self.var_mv = jnp.ones((channels,), jnp.float32)
        self.step = 0
        self.training = True
        self.qmode = 'F'  # default FixedQuantize mode
        self._train_fn = None
        self._eval_fn = None
        self._train_qmode = None
        self._eval_qmode = None

    def _get_train_fn(self):
        if self._train_fn is None or self._train_qmode != self.qmode:
            self._train_fn = jax.jit(functools.partial(
                _train_step, mom_ba=self.mom_ba, mom_mv=self.mom_mv,
                eps=self.eps, qbits_a=self.qbits['a'], amax=self.qbits['amax'],
                qbits_b=self.qbits['b'], bmax=self.qbits['bmax'],
                qmode=self.qmode, update_every=self.update_every))
            self._train_qmode = self.qmode
        return self._train_fn

    def _get_eval_fn(self):
        if self._eval_fn is None or self._eval_qmode != self.qmode:
            self._eval_fn = jax.jit(functools.partial(
                _eval_step, eps=self.eps,
                qbits_a=self.qbits['a'], amax=self.qbits['amax'],
                qbits_b=self.qbits['b'], bmax=self.qbits['bmax'],
                qmode=self.qmode))
            self._eval_qmode = self.qmode
        return self._eval_fn

    def forward(self, X):
        # TODO(synk): ST_ceil/ST_round straight-through-estimator backward only
        #             affects gradients; the forward pass here is complete.
        self.step += 1
        N, C, H, W = X.shape
        assert C == self.channels
        if self.training:
            fn = self._get_train_fn()
            (Y, self.mean_ba, self.msq_ba, self.mu, self.std,
             self.mean_mv, self.var_mv) = fn(
                X, self.gamma, self.beta, self.mean_ba, self.msq_ba,
                self.mean_mv, self.var_mv,
                jnp.asarray(self.step, dtype=jnp.int32))
        else:
            fn = self._get_eval_fn()
            Y, self.mu, self.std = fn(X, self.gamma, self.beta,
                                      self.mean_mv, self.var_mv)
        return Y


# ----------------------------------------------------------------------------
# Pure-JAX reference of one training step from fresh buffers (for validation)
# ----------------------------------------------------------------------------
def reference_forward(X, gamma, beta, qbits, mom_ba, eps=1e-08, step=1):
    N, C, H, W = X.shape
    x2d = jnp.transpose(X, (0, 2, 3, 1)).reshape(-1, C)
    mean = x2d.mean(axis=0)
    msq = (x2d ** 2).mean(axis=0)
    mean_ba = (1 - mom_ba) * mean
    msq_ba = (1 - mom_ba) * msq
    bc = 1.0 - mom_ba ** step
    mu = mean_ba / bc
    var = jax.nn.relu(msq_ba / bc - mu ** 2)
    std = jnp.sqrt(var + eps)
    gq = jnp.clip(gamma, -qbits['bmax'], qbits['bmax'])
    bq = jnp.clip(beta, -qbits['bmax'], qbits['bmax'])
    y = gq * (x2d - mu) / std + bq
    y = jnp.clip(y, -qbits['amax'], qbits['amax'])
    return jnp.transpose(y.reshape(N, H, W, C), (0, 3, 1, 2))


if __name__ == "__main__":
    key = jax.random.PRNGKey(0)
    kx, kg, kb = jax.random.split(key, 3)

    N, C, H, W = 2, 4, 16, 16
    X = jax.random.normal(kx, (N, C, H, W), dtype=jnp.float32)
    qbits = {'a': 8, 'amax': 2.0, 'b': 8, 'bmax': 2.0}

    gamma = 1.0 + 0.1 * jax.random.normal(kg, (C,), dtype=jnp.float32)
    beta = 0.1 * jax.random.normal(kb, (C,), dtype=jnp.float32)

    # ---- 'F' (clamp) mode: full end-to-end check against the reference -----
    bn = QStreamBatchnormNdPallas(N=2, channels=C, qbits=qbits)
    bn.gamma = gamma
    bn.beta = beta
    out = jax.block_until_ready(bn.forward(X))
    assert out.shape == (N, C, H, W) and out.dtype == jnp.float32

    ref = reference_forward(X, gamma, beta, qbits, mom_ba=bn.mom_ba)
    assert jnp.allclose(out, ref, atol=1e-5, rtol=1e-5), (
        f"max abs err {float(jnp.max(jnp.abs(out - ref)))}")

    # ---- 'T' (round/clip quantize) mode check --------------------------------
    bn_t = QStreamBatchnormNdPallas(N=2, channels=C, qbits=qbits)
    bn_t.qmode = 'T'
    bn_t.gamma = gamma
    bn_t.beta = beta
    out_t = jax.block_until_ready(bn_t.forward(X))
    assert out_t.shape == (N, C, H, W)

    mu = bn_t.mu.reshape(1, C, 1, 1)
    std = bn_t.std.reshape(1, C, 1, 1)
    gq = fixed_quantize_vec(gamma, qbits['b'], qbits['bmax'], 'T').reshape(1, C, 1, 1)
    bq = fixed_quantize_vec(beta, qbits['b'], qbits['bmax'], 'T').reshape(1, C, 1, 1)
    yt = gq * (X - mu) / std + bq
    lt = math.log2(qbits['amax']) - 1e-08
    t = math.exp(math.ceil(lt) * math.log(2.0))
    qmax = 2.0 ** (qbits['a'] - 1)
    ref_t = jnp.clip(jnp.round(yt * qmax / t), -qmax, qmax - 1.0) * (t / qmax)
    err = jnp.abs(out_t - ref_t)
    qstep = t / qmax
    # Allow at most a few one-quantization-step flips from scale/shift folding
    # (different float op grouping near round .5 boundaries).
    assert float(jnp.max(err)) <= qstep + 1e-4, f"T-mode max err {float(jnp.max(err))}"
    assert float(jnp.mean(err > 1e-4)) <= 0.01, "T-mode: too many mismatches"

    print("KERNEL_OK")
</pallas_src>

<mosaic_0001>
module attributes {stable_mosaic.version = 11 : i64} {
  func.func @_stats_kernel_slabbed(%arg0: i32, %arg1: i32, %arg2: memref<8x256xf32, #tpu.memory_space<vmem>>, %arg3: memref<8x1xf32, #tpu.memory_space<vmem>>, %arg4: memref<8x1xf32, #tpu.memory_space<vmem>>, %arg5: memref<8x128xf32, #tpu.memory_space<vmem>>, %arg6: memref<8x128xf32, #tpu.memory_space<vmem>>) attributes {dimension_semantics = [#tpu.dimension_semantics<parallel>, #tpu.dimension_semantics<arbitrary>], iteration_bounds = array<i64: 1, 1>, scalar_prefetch = 0 : i64, scratch_operands = 2 : i64, tpu.core_type = #tpu.core_type<tc>, window_params = [{transform_indices = @transform_0, window_bounds = array<i64: 8, 256>}, {transform_indices = @transform_1, window_bounds = array<i64: 8, 1>}, {transform_indices = @transform_2, window_bounds = array<i64: 8, 1>}]} {
    %c0 = arith.constant 0 : index
    %c0_0 = arith.constant 0 : index
    %0 = vector.load %arg2[%c0, %c0_0] : memref<8x256xf32, #tpu.memory_space<vmem>>, vector<8x128xf32>
    %1 = arith.mulf %0, %0 : vector<8x128xf32>
    %c0_1 = arith.constant 0 : index
    %c128 = arith.constant 128 : index
    %2 = vector.load %arg2[%c0_1, %c128] : memref<8x256xf32, #tpu.memory_space<vmem>>, vector<8x128xf32>
    %3 = arith.addf %0, %2 : vector<8x128xf32>
    %4 = arith.mulf %2, %2 : vector<8x128xf32>
    %5 = arith.addf %1, %4 : vector<8x128xf32>
    %c0_i32 = arith.constant 0 : i32
    %6 = arith.cmpi eq, %arg1, %c0_i32 : i32
    %7 = arith.extui %6 : i1 to i32
    %c0_i32_2 = arith.constant 0 : i32
    %8 = arith.cmpi ne, %7, %c0_i32_2 : i32
    scf.if %8 {
      %c0_7 = arith.constant 0 : index
      %c0_8 = arith.constant 0 : index
      %15 = vector.load %arg5[%c0_7, %c0_8] : memref<8x128xf32, #tpu.memory_space<vmem>>, vector<8x128xf32>
      tpu.vector_store %arg5[%c0_7, %c0_8], %3 {strides = array<i32>} : memref<8x128xf32, #tpu.memory_space<vmem>>, vector<8x128xf32>,
      %c0_9 = arith.constant 0 : index
      %c0_10 = arith.constant 0 : index
      %16 = vector.load %arg6[%c0_9, %c0_10] : memref<8x128xf32, #tpu.memory_space<vmem>>, vector<8x128xf32>
      tpu.vector_store %arg6[%c0_9, %c0_10], %5 {strides = array<i32>} : memref<8x128xf32, #tpu.memory_space<vmem>>, vector<8x128xf32>,
    } else {
    }
    %c0_i32_3 = arith.constant 0 : i32
    %9 = arith.cmpi sgt, %arg1, %c0_i32_3 : i32
    %10 = arith.extui %9 : i1 to i32
    %c0_i32_4 = arith.constant 0 : i32
    %11 = arith.cmpi ne, %10, %c0_i32_4 : i32
    scf.if %11 {
      %c0_7 = arith.constant 0 : index
      %c0_8 = arith.constant 0 : index
      %15 = vector.load %arg5[%c0_7, %c0_8] : memref<8x128xf32, #tpu.memory_space<vmem>>, vector<8x128xf32>
      %16 = arith.addf %15, %3 : vector<8x128xf32>
      %c0_9 = arith.constant 0 : index
      %c0_10 = arith.constant 0 : index
      %17 = vector.load %arg5[%c0_9, %c0_10] : memref<8x128xf32, #tpu.memory_space<vmem>>, vector<8x128xf32>
      tpu.vector_store %arg5[%c0_9, %c0_10], %16 {strides = array<i32>} : memref<8x128xf32, #tpu.memory_space<vmem>>, vector<8x128xf32>,
      %c0_11 = arith.constant 0 : index
      %c0_12 = arith.constant 0 : index
      %18 = vector.load %arg6[%c0_11, %c0_12] : memref<8x128xf32, #tpu.memory_space<vmem>>, vector<8x128xf32>
      %19 = arith.addf %18, %5 : vector<8x128xf32>
      %c0_13 = arith.constant 0 : index
      %c0_14 = arith.constant 0 : index
      %20 = vector.load %arg6[%c0_13, %c0_14] : memref<8x128xf32, #tpu.memory_space<vmem>>, vector<8x128xf32>
      tpu.vector_store %arg6[%c0_13, %c0_14], %19 {strides = array<i32>} : memref<8x128xf32, #tpu.memory_space<vmem>>, vector<8x128xf32>,
    } else {
    }
    %c0_i32_5 = arith.constant 0 : i32
    %12 = arith.cmpi eq, %arg1, %c0_i32_5 : i32
    %13 = arith.extui %12 : i1 to i32
    %c0_i32_6 = arith.constant 0 : i32
    %14 = arith.cmpi ne, %13, %c0_i32_6 : i32
    scf.if %14 {
      %c0_7 = arith.constant 0 : index
      %c0_8 = arith.constant 0 : index
      %15 = vector.load %arg5[%c0_7, %c0_8] : memref<8x128xf32, #tpu.memory_space<vmem>>, vector<8x128xf32>
      %cst = arith.constant dense<0.000000e+00> : vector<8xf32>
      %16 = vector.multi_reduction <add>, %15, %cst [1] : vector<8x128xf32> to vector<8xf32>
      %17 = vector.shape_cast %16 : vector<8xf32> to vector<8x1xf32>
      %c0_9 = arith.constant 0 : index
      %c0_10 = arith.constant 0 : index
      %18 = vector.load %arg3[%c0_9, %c0_10] : memref<8x1xf32, #tpu.memory_space<vmem>>, vector<8x1xf32>
      tpu.vector_store %arg3[%c0_9, %c0_10], %17 {strides = array<i32>} : memref<8x1xf32, #tpu.memory_space<vmem>>, vector<8x1xf32>,
      %c0_11 = arith.constant 0 : index
      %c0_12 = arith.constant 0 : index
      %19 = vector.load %arg6[%c0_11, %c0_12] : memref<8x128xf32, #tpu.memory_space<vmem>>, vector<8x128xf32>
      %cst_13 = arith.constant dense<0.000000e+00> : vector<8xf32>
      %20 = vector.multi_reduction <add>, %19, %cst_13 [1] : vector<8x128xf32> to vector<8xf32>
      %21 = vector.shape_cast %20 : vector<8xf32> to vector<8x1xf32>
      %c0_14 = arith.constant 0 : index
      %c0_15 = arith.constant 0 : index
      %22 = vector.load %arg4[%c0_14, %c0_15] : memref<8x1xf32, #tpu.memory_space<vmem>>, vector<8x1xf32>
      tpu.vector_store %arg4[%c0_14, %c0_15], %21 {strides = array<i32>} : memref<8x1xf32, #tpu.memory_space<vmem>>, vector<8x1xf32>,
    } else {
    }
    return
  }
  func.func @transform_0(%arg0: i32, %arg1: i32) -> (i32, i32) {
    %c0_i32 = arith.constant 0 : i32
    return %arg0, %arg1 : i32, i32
  }
  func.func @transform_1(%arg0: i32, %arg1: i32) -> (i32, i32) {
    %c0_i32 = arith.constant 0 : i32
    %c0_i32_0 = arith.constant 0 : i32
    return %arg0, %c0_i32 : i32, i32
  }
  func.func @transform_2(%arg0: i32, %arg1: i32) -> (i32, i32) {
    %c0_i32 = arith.constant 0 : i32
    %c0_i32_0 = arith.constant 0 : i32
    return %arg0, %c0_i32 : i32, i32
  }
}

module attributes {stable_mosaic.version = 11 : i64} {
  func.func @_norm_kernel(%arg0: i32, %arg1: i32, %arg2: memref<8x256xf32, #tpu.memory_space<vmem>>, %arg3: memref<8x1xf32, #tpu.memory_space<vmem>>, %arg4: memref<8x1xf32, #tpu.memory_space<vmem>>, %arg5: memref<8x256xf32, #tpu.memory_space<vmem>>) attributes {dimension_semantics = [#tpu.dimension_semantics<parallel>, #tpu.dimension_semantics<parallel>], iteration_bounds = array<i64: 1, 1>, scalar_prefetch = 0 : i64, scratch_operands = 0 : i64, tpu.core_type = #tpu.core_type<tc>, window_params = [{transform_indices = @transform_0, window_bounds = array<i64: 8, 256>}, {transform_indices = @transform_1, window_bounds = array<i64: 8, 1>}, {transform_indices = @transform_2, window_bounds = array<i64: 8, 1>}, {transform_indices = @transform_3, window_bounds = array<i64: 8, 256>}]} {
    %c0 = arith.constant 0 : index
    %c0_0 = arith.constant 0 : index
    %0 = vector.load %arg2[%c0, %c0_0] : memref<8x256xf32, #tpu.memory_space<vmem>>, vector<8x256xf32>
    %c0_1 = arith.constant 0 : index
    %c0_2 = arith.constant 0 : index
    %1 = vector.load %arg3[%c0_1, %c0_2] : memref<8x1xf32, #tpu.memory_space<vmem>>, vector<8x1xf32>
    %2 = vector.broadcast %1 : vector<8x1xf32> to vector<8x256xf32>
    %3 = arith.mulf %0, %2 : vector<8x256xf32>
    %c0_3 = arith.constant 0 : index
    %c0_4 = arith.constant 0 : index
    %4 = vector.load %arg4[%c0_3, %c0_4] : memref<8x1xf32, #tpu.memory_space<vmem>>, vector<8x1xf32>
    %5 = vector.broadcast %4 : vector<8x1xf32> to vector<8x256xf32>
    %6 = arith.addf %3, %5 : vector<8x256xf32>
    %cst = arith.constant -2.000000e+00 : f32
    %cst_5 = arith.constant 2.000000e+00 : f32
    %7 = vector.broadcast %cst : f32 to vector<8x256xf32>
    %8 = arith.maximumf %7, %6 : vector<8x256xf32>
    %9 = vector.broadcast %cst_5 : f32 to vector<8x256xf32>
    %10 = arith.minimumf %9, %8 : vector<8x256xf32>
    %c0_6 = arith.constant 0 : index
    %c0_7 = arith.constant 0 : index
    %11 = vector.load %arg5[%c0_6, %c0_7] : memref<8x256xf32, #tpu.memory_space<vmem>>, vector<8x256xf32>
    tpu.vector_store %arg5[%c0_6, %c0_7], %10 {strides = array<i32>} : memref<8x256xf32, #tpu.memory_space<vmem>>, vector<8x256xf32>,
    return
  }
  func.func @transform_0(%arg0: i32, %arg1: i32) -> (i32, i32) {
    %c0_i32 = arith.constant 0 : i32
    return %arg0, %arg1 : i32, i32
  }
  func.func @transform_1(%arg0: i32, %arg1: i32) -> (i32, i32) {
    %c0_i32 = arith.constant 0 : i32
    %c0_i32_0 = arith.constant 0 : i32
    return %arg0, %c0_i32 : i32, i32
  }
  func.func @transform_2(%arg0: i32, %arg1: i32) -> (i32, i32) {
    %c0_i32 = arith.constant 0 : i32
    %c0_i32_0 = arith.constant 0 : i32
    return %arg0, %c0_i32 : i32, i32
  }
  func.func @transform_3(%arg0: i32, %arg1: i32) -> (i32, i32) {
    %c0_i32 = arith.constant 0 : i32
    return %arg0, %arg1 : i32, i32
  }
}

</mosaic_0001>

<llo_original>
// kernel: tile.17
$region0: #{tile.17}
  #allocation0 [shape = 's32[1]{0}', space=sflag, size = 0x4, scoped, tag = 'scoped memory for tile.17']
  %s0 = inlined_call_operand.vmem [shape: f32[4], index: 0, kind: input, shape index: {}]
  %s1 = inlined_call_operand.vmem [shape: f32[2,4], index: 1, kind: output, shape index: {}]
  // Predicated region
  $region2: #{tile.17} parent=0 // pred_check
    _
  $region3: #{tile.17} parent=0 // pred_check_branch
    %3 = sbr.rel (0) target = $region5
  $region4: #{tile.17} parent=0 // pred_region
    _
  $region5: #{tile.17} parent=0 // pred_fallthru
    _
  %v4 = vld [vmem:[%s0] ss:$0 sm:$0xff]
  %5 = vst [vmem:[%s1] sm:$0x3] %v4

// kernel: tile.0
$region0: #{tile.0}
  %s0 = inlined_call_operand.vmem [shape: f32[2,4], index: 0, kind: input, shape index: {}]
  %s1 = inlined_call_operand.vmem [shape: f32[8,1], index: 1, kind: output, shape index: {}]
  $region1: #{tile.0} parent=0
    #allocation0 [shape = 'u8[4096]{0}', space=vmem, size = 0x1000, scoped, tag = 'scoped mem for input reshape']
    %s3 = sshll.u32 1, 2
    %s4 = ssub.s32 %s3, 1
    %v5 = vld [vmem:[%s0] sm:%s4]
    %6 = vst [vmem:[#allocation0] sm:%s4] %v5
    %v7 = vld [vmem:[#allocation0] sm:$0x3]
    %vm8 = vcmask 7168
    %9 = vst.msk [vmem:[%s1] ss:$4 sm:$0x3] %vm8, %v7
    %v10 = vld [vmem:[#allocation0] sm:$0x3]
    %11 = vrot.lane.b32.xlu0 %v10, 127
    %v12 = vpop.permute.xlu0 %11
    %vm13 = vcmask 7168
    %s14 = scalar_lea.vmem %s1, 1
    %15 = vst.msk [vmem:[%s14] ss:$4 sm:$0x3] %vm13, %v12
    %v16 = vld [vmem:[#allocation0] sm:$0x3]
    %17 = vrot.lane.b32.xlu0 %v16, 126
    %v18 = vpop.permute.xlu0 %17
    %vm19 = vcmask 7168
    %s20 = scalar_lea.vmem %s1, 2
    %21 = vst.msk [vmem:[%s20] ss:$4 sm:$0x3] %vm19, %v18
    %v22 = vld [vmem:[#allocation0] sm:$0x3]
    %23 = vrot.lane.b32.xlu0 %v22, 125
    %v24 = vpop.permute.xlu0 %23
    %vm25 = vcmask 7168
    %s26 = scalar_lea.vmem %s1, 3
    %27 = vst.msk [vmem:[%s26] ss:$4 sm:$0x3] %vm25, %v24

// kernel: _train_step.2
$region0: #{_train_step.2}
  #allocation0 [shape = 'u32[]', space=smem, size = 0x4, offset = 0x4, fixed_abs, tag = 'smem constant byte address 0x4 - core index']
  #allocation1 [shape = 'u32[144,128]{1,0:T(1,128)}', space=vmem, size = 0x12000, scoped, tag = 'internal scratch']
  #allocation2 [shape = 'f32[8,128]{1,0:T(8,128)}', space=vmem, size = 0x1000, scoped, tag = 'scratch operand']
  #allocation3 [shape = 'f32[8,128]{1,0:T(8,128)}', space=vmem, size = 0x1000, scoped, tag = 'scratch operand']
  %s0 = inlined_call_operand.vmem [shape: f32[8,256], index: 0, kind: input, shape index: {}]
  %s1 = inlined_call_operand.vmem [shape: f32[8,1], index: 1, kind: output, shape index: {0}]
  %s2 = inlined_call_operand.vmem [shape: f32[8,1], index: 2, kind: output, shape index: {1}]
  %3 = xla_tuple %s1, %s2
  %s4 = sld [smem:[#allocation0]]
  $region34: #{_train_step.2} parent=0
    _
  %s6 = ssub.s32 1, %s4
  %s7 = scalar_select 0, %s6, %s4
  // Predicated region
  $region2: #{_train_step.2} parent=0 // pred_check
    _
  $region3: #{_train_step.2} parent=0 // pred_check_branch
    %9 = sbr.rel (0) target = $region5
  $region4: #{_train_step.2} parent=0 // pred_region
    _
  $region5: #{_train_step.2} parent=0 // pred_fallthru
    _
  %v10 = vld [vmem:[%s0] sm:$0xff]
  %v11 = vmul.f32 %v10, %v10
  %v12 = vld [vmem:[%s0 + $0x8] sm:$0xff]
  %v13 = vadd.f32 %v10, %v12
  %v14 = vmul.f32 %v12, %v12
  %v15 = vadd.f32 %v11, %v14
  %p16 = scmp.eq.s32.totalorder 0, 0
  // Predicated region
  $region6: #{_train_step.2} parent=0 // pred_check
    %p17 = pneg %p16
  $region7: #{_train_step.2} parent=0 // pred_check_branch
    %19 = sbr.rel (%p17) target = $region9
  $region8: #{_train_step.2} parent=0 // pred_region
    %20 = vst [vmem:[#allocation2] sm:$0xff] %v13
    %21 = vst [vmem:[#allocation3] sm:$0xff] %v15
  $region9: #{_train_step.2} parent=0 // pred_fallthru
    _
  %p22 = scmp.gt.s32.totalorder 0, 0
  // Predicated region
  $region10: #{_train_step.2} parent=0 // pred_check
    %p23 = pneg %p22
  $region11: #{_train_step.2} parent=0 // pred_check_branch
    %25 = sbr.rel (%p23) target = $region13
  $region12: #{_train_step.2} parent=0 // pred_region
    %v26 = vld [vmem:[#allocation2] sm:$0xff]
    %v27 = vadd.f32 %v26, %v13
    %28 = vst [vmem:[#allocation2] sm:$0xff] %v27
    %v29 = vld [vmem:[#allocation3] sm:$0xff]
    %v30 = vadd.f32 %v29, %v15
    %31 = vst [vmem:[#allocation3] sm:$0xff] %v30
  $region13: #{_train_step.2} parent=0 // pred_fallthru
    _
  // Predicated region
  $region14: #{_train_step.2} parent=0 // pred_check
    %p32 = pneg %p16
  $region15: #{_train_step.2} parent=0 // pred_check_branch
    %34 = sbr.rel (%p32) target = $region17
  $region16: #{_train_step.2} parent=0 // pred_region
    %v35 = vld [vmem:[#allocation2] sm:$0xff]
    %36 = vadd.xlane.f32.xlu0 %v35
    %v37 = vpop.xlane.xlu0 %36
    %vm38 = vcmask 7168
    %39 = vst.msk [vmem:[%s1] sm:$0xff] %vm38, %v37
    %v40 = vld [vmem:[#allocation3] sm:$0xff]
    %41 = vadd.xlane.f32.xlu0 %v40
    %v42 = vpop.xlane.xlu0 %41
    %43 = vst.msk [vmem:[%s2] sm:$0xff] %vm38, %v42
  $region17: #{_train_step.2} parent=0 // pred_fallthru
    _
  // Predicated region
  $region18: #{_train_step.2} parent=0 // pred_check
    _
  $region19: #{_train_step.2} parent=0 // pred_check_branch
    %45 = sbr.rel (0) target = $region21
  $region20: #{_train_step.2} parent=0 // pred_region
    _
  $region21: #{_train_step.2} parent=0 // pred_fallthru
    _
  // Predicated region
  $region22: #{_train_step.2} parent=0 // pred_check
    _
  $region23: #{_train_step.2} parent=0 // pred_check_branch
    %47 = sbr.rel (0) target = $region25
  $region24: #{_train_step.2} parent=0 // pred_region
    _
  $region25: #{_train_step.2} parent=0 // pred_fallthru
    _
  // Predicated region
  $region26: #{_train_step.2} parent=0 // pred_check
    _
  $region27: #{_train_step.2} parent=0 // pred_check_branch
    %49 = sbr.rel (0) target = $region29
  $region28: #{_train_step.2} parent=0 // pred_region
    _
  $region29: #{_train_step.2} parent=0 // pred_fallthru
    _
  // Predicated region
  $region30: #{_train_step.2} parent=0 // pred_check
    _
  $region31: #{_train_step.2} parent=0 // pred_check_branch
    %51 = sbr.rel (0) target = $region33
  $region32: #{_train_step.2} parent=0 // pred_region
    _
  $region33: #{_train_step.2} parent=0 // pred_fallthru
    _

// kernel: _train_step.3
$region0: #{_train_step.3}
  #allocation0 [shape = 'u32[]', space=smem, size = 0x4, offset = 0x4, fixed_abs, tag = 'smem constant byte address 0x4 - core index']
  #allocation1 [shape = 'u32[144,128]{1,0:T(1,128)}', space=vmem, size = 0x12000, scoped, tag = 'internal scratch']
  %s0 = inlined_call_operand.vmem [shape: f32[8,256], index: 0, kind: input, shape index: {}]
  %s1 = inlined_call_operand.vmem [shape: f32[8,1], index: 1, kind: input, shape index: {}]
  %s2 = inlined_call_operand.vmem [shape: f32[8,1], index: 2, kind: input, shape index: {}]
  %s3 = inlined_call_operand.vmem [shape: f32[8,256], index: 3, kind: output, shape index: {}]
  %s4 = sld [smem:[#allocation0]]
  $region22: #{_train_step.3} parent=0
    _
  %s6 = ssub.s32 1, %s4
  %s7 = scalar_select 0, %s6, %s4
  // Predicated region
  $region2: #{_train_step.3} parent=0 // pred_check
    _
  $region3: #{_train_step.3} parent=0 // pred_check_branch
    %9 = sbr.rel (0) target = $region5
  $region4: #{_train_step.3} parent=0 // pred_region
    _
  $region5: #{_train_step.3} parent=0 // pred_fallthru
    _
  // Predicated region
  $region6: #{_train_step.3} parent=0 // pred_check
    _
  $region7: #{_train_step.3} parent=0 // pred_check_branch
    %11 = sbr.rel (0) target = $region9
  $region8: #{_train_step.3} parent=0 // pred_region
    _
  $region9: #{_train_step.3} parent=0 // pred_fallthru
    _
  // Predicated region
  $region10: #{_train_step.3} parent=0 // pred_check
    _
  $region11: #{_train_step.3} parent=0 // pred_check_branch
    %13 = sbr.rel (0) target = $region13
  $region12: #{_train_step.3} parent=0 // pred_region
    _
  $region13: #{_train_step.3} parent=0 // pred_fallthru
    _
  %v14 = vld [vmem:[%s0] sm:$0xff]
  %v15 = vld [vmem:[%s0 + $0x8] sm:$0xff]
  %v16 = vld [vmem:[%s1] sm:$0xff]
  %18 = vset.pattern.permute.xlu0 0
  %19 = vperm.xlu0 %18, %v16
  %v20 = vpop.permute.xlu0 %19
  %v22 = vmul.f32 %v14, %v20
  %v23 = vmul.f32 %v15, %v20
  %v24 = vld [vmem:[%s2] sm:$0xff]
  %26 = vset.pattern.permute.xlu0 0
  %27 = vperm.xlu0 %26, %v24
  %v28 = vpop.permute.xlu0 %27
  %v30 = vadd.f32 %v22, %v28
  %v31 = vadd.f32 %v23, %v28
  %v32 = vmax.f32 %v30, -2.0
  %v33 = vmax.f32 %v31, -2.0
  %v34 = vmin.f32 %v32, 2.0
  %v35 = vmin.f32 %v33, 2.0
  %36 = vst [vmem:[%s3] sm:$0xff] %v34
  %37 = vst [vmem:[%s3 + $0x8] sm:$0xff] %v35
  // Predicated region
  $region14: #{_train_step.3} parent=0 // pred_check
    _
  $region15: #{_train_step.3} parent=0 // pred_check_branch
    %39 = sbr.rel (0) target = $region17
  $region16: #{_train_step.3} parent=0 // pred_region
    _
  $region17: #{_train_step.3} parent=0 // pred_fallthru
    _
  // Predicated region
  $region18: #{_train_step.3} parent=0 // pred_check
    _
  $region19: #{_train_step.3} parent=0 // pred_check_branch
    %41 = sbr.rel (0) target = $region21
  $region20: #{_train_step.3} parent=0 // pred_region
    _
  $region21: #{_train_step.3} parent=0 // pred_fallthru
    _

</llo_original>
